<compile_context>
chip_gen: v7x
topology: tpu7x:2x2x1
jax: 0.10.0
libtpu: 0.0.40
codegen_flags: <defaults>
</compile_context>

<pallas_src>
import functools
import math

import jax
import jax.numpy as jnp
from jax import lax
from jax.experimental import pallas as pl
from jax.experimental.pallas import tpu as pltpu

LANE = 128   # vreg lane width
SUB = 8      # f32 sublane tile


def _round_up(a, b):
    return -(-a // b) * b


def _logit(t):
    if t <= 0.0:
        return -float("inf")
    if t >= 1.0:
        return float("inf")
    return math.log(t / (1.0 - t))


def _bce_dice_kernel(x_ref, y_ref, acc_ref, *, n, nb_total, nb_per_split,
                     block_rows, slab_rows, logit_thr, exact_tiling):
    """Accumulates 4 global sums into a per-core-resident (4, 8, 128) block.

    acc[0] = sum of elementwise BCE-with-logits terms
    acc[1] = sum of pred_bin * target   (dice intersection)
    acc[2] = sum of pred_bin
    acc[3] = sum of target
    """
    c = pl.program_id(0)          # core-split axis ("parallel")
    i = pl.program_id(1)          # block axis within the split ("arbitrary")
    logical_block = c * nb_per_split + i

    @pl.when(i == 0)
    def _():
        acc_ref[...] = jnp.zeros_like(acc_ref)

    num_slabs = block_rows // slab_rows
    unroll = min(8, num_slabs)

    def slab_sums(xv, yv, valid):
        # Numerically stable BCE-with-logits: max(x,0) - x*y + log1p(exp(-|x|))
        bce = jnp.maximum(xv, 0.0) - xv * yv + jnp.log1p(jnp.exp(-jnp.abs(xv)))
        # sigmoid(x) > thr  <=>  x > logit(thr)  (monotone) — no EUP sigmoid.
        pb = (xv > logit_thr).astype(jnp.float32)
        if valid is not None:
            bce = jnp.where(valid, bce, 0.0)
            pb = jnp.where(valid, pb, 0.0)

        def ssum(v):
            # (slab_rows, 128) -> (8, 128) with pure VPU adds (no XLU); stays
            # in vregs — slabs are small enough that nothing spills to VMEM.
            return v.reshape(-1, SUB, LANE).sum(axis=0)

        return ssum(bce), ssum(pb * yv), ssum(pb), ssum(yv)

    def reduce_block(masked):
        def body(s, carry):
            a0, a1, a2, a3 = carry
            start = pl.multiple_of(s * slab_rows, slab_rows)
            xv = x_ref[pl.ds(start, slab_rows), :].astype(jnp.float32)
            yv = y_ref[pl.ds(start, slab_rows), :].astype(jnp.float32)
            valid = None
            if masked:
                # TODO(synk): int32 global-index math overflows for n >= 2**31.
                base = (logical_block * block_rows + start) * LANE
                row = lax.broadcasted_iota(jnp.int32, (slab_rows, LANE), 0)
                lane = lax.broadcasted_iota(jnp.int32, (slab_rows, LANE), 1)
                valid = (base + row * LANE + lane) < n
                xv = jnp.where(valid, xv, 0.0)
                yv = jnp.where(valid, yv, 0.0)
            s0, s1, s2, s3 = slab_sums(xv, yv, valid)
            return (a0 + s0, a1 + s1, a2 + s2, a3 + s3)

        zero = jnp.zeros((SUB, LANE), jnp.float32)
        a0, a1, a2, a3 = lax.fori_loop(0, num_slabs, body,
                                       (zero, zero, zero, zero),
                                       unroll=unroll)
        acc_ref[0, :, :] += a0
        acc_ref[1, :, :] += a1
        acc_ref[2, :, :] += a2
        acc_ref[3, :, :] += a3

    if exact_tiling:
        # Exactly tiled: every block is fully valid — no mask, no compare.
        reduce_block(masked=False)
    else:
        # Only the last real block (ragged tail / lane padding) and any clamped
        # phantom block (uneven core split) need the mask; hot path stays lean.
        needs_mask = logical_block >= nb_total - 1

        @pl.when(jnp.logical_not(needs_mask))
        def _():
            reduce_block(masked=False)

        @pl.when(needs_mask)
        def _():
            reduce_block(masked=True)


def bce_dice_with_logits_loss(predictions, targets, *, bce_weight,
                              dice_threshold, eps=1e-7,
                              block_rows=8192, slab_rows=64, core_splits=2):
    """JAX/Pallas equivalent of BCEDiceWithLogitsLoss.forward."""
    dice_weight = 1.0 - bce_weight

    # Stream in native dtypes (callers may pass bf16 logits / uint8 targets to
    # cut HBM bytes); the f32 upcast happens inside the kernel.
    x = predictions.reshape(-1)
    y = targets.reshape(-1)
    n = x.shape[0]

    # Pad only up to the 128-lane width (<= 127 elements) so the flat arrays
    # can be viewed as (rows, 128); a no-op for typical NCHW sizes.
    pad = (-n) % LANE
    if pad:
        x = jnp.pad(x, (0, pad))
        y = jnp.pad(y, (0, pad))
    rows = (n + pad) // LANE

    assert slab_rows % 32 == 0  # covers f32(8)/bf16(16)/int8(32) sublane tiles
    # Multiple of slab_rows (=64): divisible by the fused slab loop and by the
    # sublane-tiling minimum of every streamable dtype.
    block_rows = max(slab_rows, min(block_rows, _round_up(rows, slab_rows)))
    block_rows = _round_up(block_rows, slab_rows)

    nb_total = pl.cdiv(rows, block_rows)
    splits = core_splits if nb_total >= core_splits else 1
    nb_per_split = pl.cdiv(nb_total, splits)

    exact_tiling = (pad == 0 and rows % block_rows == 0
                    and splits * nb_per_split == nb_total)

    x2 = x.reshape(rows, LANE)
    y2 = y.reshape(rows, LANE)

    if exact_tiling:
        def in_map(c, i):
            return (c * nb_per_split + i, 0)
    else:
        def in_map(c, i):
            # Clamp phantom blocks (uneven split / ragged tail) onto the last
            # real block; their contribution is zeroed by the in-kernel mask.
            return (jnp.minimum(c * nb_per_split + i, nb_total - 1), 0)

    in_spec = pl.BlockSpec((block_rows, LANE), in_map)
    out_spec = pl.BlockSpec((None, 4, SUB, LANE), lambda c, i: (c, 0, 0, 0))

    kernel = functools.partial(
        _bce_dice_kernel, n=n, nb_total=nb_total, nb_per_split=nb_per_split,
        block_rows=block_rows, slab_rows=slab_rows,
        logit_thr=_logit(float(dice_threshold)), exact_tiling=exact_tiling)

    partials = pl.pallas_call(
        kernel,
        out_shape=jax.ShapeDtypeStruct((splits, 4, SUB, LANE), jnp.float32),
        grid_spec=pltpu.PrefetchScalarGridSpec(
            num_scalar_prefetch=0,
            grid=(splits, nb_per_split),
            in_specs=[in_spec, in_spec],
            out_specs=out_spec,
        ),
        compiler_params=pltpu.CompilerParams(
            dimension_semantics=("parallel", "arbitrary"),
            vmem_limit_bytes=32 * 1024 * 1024),
    )(x2, y2)

    sums = jnp.sum(partials, axis=(0, 2, 3))              # (4,) tiny XLA reduce
    sum_bce, sum_inter, sum_pb, sum_t = sums[0], sums[1], sums[2], sums[3]

    bce_loss = sum_bce / jnp.float32(n)                   # mean reduction
    dice = 2.0 * sum_inter / (sum_pb + sum_t + eps)       # Dice coefficient
    return bce_weight * bce_loss + dice_weight * (1.0 - dice)


def _reference(predictions, targets, *, bce_weight, dice_threshold, eps=1e-7):
    """Pure-JAX reference for sanity checking."""
    x = predictions.astype(jnp.float32)
    y = targets.astype(jnp.float32)
    bce = jnp.mean(jnp.maximum(x, 0) - x * y + jnp.log1p(jnp.exp(-jnp.abs(x))))
    pb = (jax.nn.sigmoid(x) > dice_threshold).astype(jnp.float32)
    dice = 2.0 * jnp.sum(pb * y) / (jnp.sum(pb) + jnp.sum(y) + eps)
    return bce_weight * bce + (1.0 - bce_weight) * (1.0 - dice)


if __name__ == "__main__":
    # "Module parameters": scalar hyperparameters set deterministically.
    bce_weight = 0.7
    dice_threshold = 0.5

    key = jax.random.PRNGKey(0)
    k1, k2, k3, k4, k5, k6 = jax.random.split(key, 6)

    # NCHW: batch=2, channels=4, spatial=16x16 (2048 elems; masked tail path
    # because the single 64-row block is larger than the 16 data rows).
    preds = jax.random.normal(k1, (2, 4, 16, 16), dtype=jnp.float32)
    targets = (jax.random.uniform(k2, (2, 4, 16, 16)) > 0.5).astype(jnp.float32)
    loss = bce_dice_with_logits_loss(
        preds, targets, bce_weight=bce_weight, dice_threshold=dice_threshold)
    loss = jax.block_until_ready(loss)
    ref = _reference(preds, targets, bce_weight=bce_weight,
                     dice_threshold=dice_threshold)
    assert jnp.allclose(loss, ref, atol=1e-5, rtol=1e-5), (loss, ref)

    # Ragged size (1155 elements) exercising the in-kernel tail mask.
    preds_r = jax.random.normal(k3, (3, 5, 7, 11), dtype=jnp.float32)
    targets_r = (jax.random.uniform(k4, (3, 5, 7, 11)) > 0.5).astype(jnp.float32)
    loss_r = bce_dice_with_logits_loss(
        preds_r, targets_r, bce_weight=bce_weight,
        dice_threshold=dice_threshold)
    loss_r = jax.block_until_ready(loss_r)
    ref_r = _reference(preds_r, targets_r, bce_weight=bce_weight,
                       dice_threshold=dice_threshold)
    assert jnp.allclose(loss_r, ref_r, atol=1e-5, rtol=1e-5), (loss_r, ref_r)

    # Exactly-tiled multi-block case (32768 elems, block_rows=64) exercising
    # the lean (no-mask) specialization and both grid axes (splits=2).
    preds_e = jax.random.normal(k5, (2, 4, 64, 64), dtype=jnp.float32)
    targets_e = (jax.random.uniform(k6, (2, 4, 64, 64)) > 0.5).astype(jnp.float32)
    loss_e = bce_dice_with_logits_loss(
        preds_e, targets_e, bce_weight=bce_weight,
        dice_threshold=dice_threshold, block_rows=64)
    loss_e = jax.block_until_ready(loss_e)
    ref_e = _reference(preds_e, targets_e, bce_weight=bce_weight,
                       dice_threshold=dice_threshold)
    assert jnp.allclose(loss_e, ref_e, atol=1e-5, rtol=1e-5), (loss_e, ref_e)

    print("KERNEL_OK")
</pallas_src>

<mosaic_0001>
module attributes {stable_mosaic.version = 11 : i64} {
  func.func @_bce_dice_kernel(%arg0: i32, %arg1: i32, %arg2: memref<64x128xf32, #tpu.memory_space<vmem>>, %arg3: memref<64x128xf32, #tpu.memory_space<vmem>>, %arg4: memref<1x4x8x128xf32, #tpu.memory_space<vmem>>) attributes {dimension_semantics = [#tpu.dimension_semantics<parallel>, #tpu.dimension_semantics<arbitrary>], iteration_bounds = array<i64: 1, 1>, scalar_prefetch = 0 : i64, scratch_operands = 0 : i64, tpu.core_type = #tpu.core_type<tc>, window_params = [{transform_indices = @transform_0, window_bounds = array<i64: 64, 128>}, {transform_indices = @transform_1, window_bounds = array<i64: 64, 128>}, {transform_indices = @transform_2, window_bounds = array<i64: 1, 4, 8, 128>}]} {
    %c1_i32 = arith.constant 1 : i32
    %0 = arith.muli %arg0, %c1_i32 : i32
    %1 = arith.addi %0, %arg1 : i32
    %c0_i32 = arith.constant 0 : i32
    %2 = arith.cmpi eq, %arg1, %c0_i32 : i32
    %3 = arith.extui %2 : i1 to i32
    %c0_i32_0 = arith.constant 0 : i32
    %4 = arith.cmpi ne, %3, %c0_i32_0 : i32
    scf.if %4 {
      %cst = arith.constant 0.000000e+00 : f32
      %11 = vector.broadcast %cst : f32 to vector<4x8x128xf32>
      %c0 = arith.constant 0 : index
      %c0_4 = arith.constant 0 : index
      %c0_5 = arith.constant 0 : index
      %c0_6 = arith.constant 0 : index
      %12 = vector.load %arg4[%c0, %c0_4, %c0_5, %c0_6] : memref<1x4x8x128xf32, #tpu.memory_space<vmem>>, vector<1x4x8x128xf32>
      %13 = vector.shape_cast %12 : vector<1x4x8x128xf32> to vector<4x8x128xf32>
      %14 = vector.shape_cast %11 : vector<4x8x128xf32> to vector<1x4x8x128xf32>
      tpu.vector_store %arg4[%c0, %c0_4, %c0_5, %c0_6], %14 {strides = array<i32>} : memref<1x4x8x128xf32, #tpu.memory_space<vmem>>, vector<1x4x8x128xf32>,
    } else {
    }
    %c0_i32_1 = arith.constant 0 : i32
    %5 = arith.cmpi sge, %1, %c0_i32_1 : i32
    %true = arith.constant true
    %6 = arith.xori %5, %true : i1
    %7 = arith.extui %6 : i1 to i32
    %c0_i32_2 = arith.constant 0 : i32
    %8 = arith.cmpi ne, %7, %c0_i32_2 : i32
    scf.if %8 {
      %cst = arith.constant 0.000000e+00 : f32
      %11 = vector.broadcast %cst : f32 to vector<8x128xf32>
      %c0_i32_4 = arith.constant 0 : i32
      %c64_i32 = arith.constant 64 : i32
      %12 = arith.muli %c0_i32_4, %c64_i32 : i32
      %13 = tpu.assume_multiple %12, 64 : i32
      %14 = arith.index_cast %13 : i32 to index
      %c0 = arith.constant 0 : index
      %15 = vector.load %arg2[%14, %c0] : memref<64x128xf32, #tpu.memory_space<vmem>>, vector<64x128xf32>
      %16 = arith.index_cast %13 : i32 to index
      %c0_5 = arith.constant 0 : index
      %17 = vector.load %arg3[%16, %c0_5] : memref<64x128xf32, #tpu.memory_space<vmem>>, vector<64x128xf32>
      %cst_6 = arith.constant 0.000000e+00 : f32
      %18 = vector.broadcast %cst_6 : f32 to vector<64x128xf32>
      %19 = arith.maximumf %15, %18 : vector<64x128xf32>
      %20 = arith.mulf %15, %17 : vector<64x128xf32>
      %21 = arith.subf %19, %20 : vector<64x128xf32>
      %22 = math.absf %15 : vector<64x128xf32>
      %cst_7 = arith.constant 0.000000e+00 : f32
      %23 = vector.broadcast %cst_7 : f32 to vector<64x128xf32>
      %24 = arith.subf %23, %22 : vector<64x128xf32>
      %25 = math.exp %24 : vector<64x128xf32>
      %26 = math.log1p %25 : vector<64x128xf32>
      %27 = arith.addf %21, %26 : vector<64x128xf32>
      %cst_8 = arith.constant 0.000000e+00 : f32
      %28 = vector.broadcast %cst_8 : f32 to vector<64x128xf32>
      %29 = arith.cmpf ogt, %15, %28 : vector<64x128xf32>
      %30 = arith.extui %29 : vector<64x128xi1> to vector<64x128xi32>
      %31 = arith.sitofp %30 : vector<64x128xi32> to vector<64x128xf32>
      %32 = vector.shape_cast %27 : vector<64x128xf32> to vector<8x8x128xf32>
      %cst_9 = arith.constant dense<0.000000e+00> : vector<8x128xf32>
      %33 = vector.multi_reduction <add>, %32, %cst_9 [0] : vector<8x8x128xf32> to vector<8x128xf32>
      %34 = arith.mulf %31, %17 : vector<64x128xf32>
      %35 = vector.shape_cast %34 : vector<64x128xf32> to vector<8x8x128xf32>
      %cst_10 = arith.constant dense<0.000000e+00> : vector<8x128xf32>
      %36 = vector.multi_reduction <add>, %35, %cst_10 [0] : vector<8x8x128xf32> to vector<8x128xf32>
      %37 = vector.shape_cast %31 : vector<64x128xf32> to vector<8x8x128xf32>
      %cst_11 = arith.constant dense<0.000000e+00> : vector<8x128xf32>
      %38 = vector.multi_reduction <add>, %37, %cst_11 [0] : vector<8x8x128xf32> to vector<8x128xf32>
      %39 = vector.shape_cast %17 : vector<64x128xf32> to vector<8x8x128xf32>
      %cst_12 = arith.constant dense<0.000000e+00> : vector<8x128xf32>
      %40 = vector.multi_reduction <add>, %39, %cst_12 [0] : vector<8x8x128xf32> to vector<8x128xf32>
      %41 = arith.addf %11, %33 : vector<8x128xf32>
      %42 = arith.addf %11, %36 : vector<8x128xf32>
      %43 = arith.addf %11, %38 : vector<8x128xf32>
      %44 = arith.addf %11, %40 : vector<8x128xf32>
      %c1_i32_13 = arith.constant 1 : i32
      %c0_14 = arith.constant 0 : index
      %c0_15 = arith.constant 0 : index
      %c0_16 = arith.constant 0 : index
      %c0_17 = arith.constant 0 : index
      %45 = vector.load %arg4[%c0_14, %c0_15, %c0_16, %c0_17] : memref<1x4x8x128xf32, #tpu.memory_space<vmem>>, vector<1x1x8x128xf32>
      %46 = vector.shape_cast %45 : vector<1x1x8x128xf32> to vector<8x128xf32>
      %47 = arith.addf %46, %41 : vector<8x128xf32>
      %c0_18 = arith.constant 0 : index
      %c0_19 = arith.constant 0 : index
      %c0_20 = arith.constant 0 : index
      %c0_21 = arith.constant 0 : index
      %48 = vector.load %arg4[%c0_18, %c0_19, %c0_20, %c0_21] : memref<1x4x8x128xf32, #tpu.memory_space<vmem>>, vector<1x1x8x128xf32>
      %49 = vector.shape_cast %48 : vector<1x1x8x128xf32> to vector<8x128xf32>
      %50 = vector.shape_cast %47 : vector<8x128xf32> to vector<1x1x8x128xf32>
      tpu.vector_store %arg4[%c0_18, %c0_19, %c0_20, %c0_21], %50 {strides = array<i32>} : memref<1x4x8x128xf32, #tpu.memory_space<vmem>>, vector<1x1x8x128xf32>,
      %c0_22 = arith.constant 0 : index
      %c1 = arith.constant 1 : index
      %c0_23 = arith.constant 0 : index
      %c0_24 = arith.constant 0 : index
      %51 = vector.load %arg4[%c0_22, %c1, %c0_23, %c0_24] : memref<1x4x8x128xf32, #tpu.memory_space<vmem>>, vector<1x1x8x128xf32>
      %52 = vector.shape_cast %51 : vector<1x1x8x128xf32> to vector<8x128xf32>
      %53 = arith.addf %52, %42 : vector<8x128xf32>
      %c0_25 = arith.constant 0 : index
      %c1_26 = arith.constant 1 : index
      %c0_27 = arith.constant 0 : index
      %c0_28 = arith.constant 0 : index
      %54 = vector.load %arg4[%c0_25, %c1_26, %c0_27, %c0_28] : memref<1x4x8x128xf32, #tpu.memory_space<vmem>>, vector<1x1x8x128xf32>
      %55 = vector.shape_cast %54 : vector<1x1x8x128xf32> to vector<8x128xf32>
      %56 = vector.shape_cast %53 : vector<8x128xf32> to vector<1x1x8x128xf32>
      tpu.vector_store %arg4[%c0_25, %c1_26, %c0_27, %c0_28], %56 {strides = array<i32>} : memref<1x4x8x128xf32, #tpu.memory_space<vmem>>, vector<1x1x8x128xf32>,
      %c0_29 = arith.constant 0 : index
      %c2 = arith.constant 2 : index
      %c0_30 = arith.constant 0 : index
      %c0_31 = arith.constant 0 : index
      %57 = vector.load %arg4[%c0_29, %c2, %c0_30, %c0_31] : memref<1x4x8x128xf32, #tpu.memory_space<vmem>>, vector<1x1x8x128xf32>
      %58 = vector.shape_cast %57 : vector<1x1x8x128xf32> to vector<8x128xf32>
      %59 = arith.addf %58, %43 : vector<8x128xf32>
      %c0_32 = arith.constant 0 : index
      %c2_33 = arith.constant 2 : index
      %c0_34 = arith.constant 0 : index
      %c0_35 = arith.constant 0 : index
      %60 = vector.load %arg4[%c0_32, %c2_33, %c0_34, %c0_35] : memref<1x4x8x128xf32, #tpu.memory_space<vmem>>, vector<1x1x8x128xf32>
      %61 = vector.shape_cast %60 : vector<1x1x8x128xf32> to vector<8x128xf32>
      %62 = vector.shape_cast %59 : vector<8x128xf32> to vector<1x1x8x128xf32>
      tpu.vector_store %arg4[%c0_32, %c2_33, %c0_34, %c0_35], %62 {strides = array<i32>} : memref<1x4x8x128xf32, #tpu.memory_space<vmem>>, vector<1x1x8x128xf32>,
      %c0_36 = arith.constant 0 : index
      %c3 = arith.constant 3 : index
      %c0_37 = arith.constant 0 : index
      %c0_38 = arith.constant 0 : index
      %63 = vector.load %arg4[%c0_36, %c3, %c0_37, %c0_38] : memref<1x4x8x128xf32, #tpu.memory_space<vmem>>, vector<1x1x8x128xf32>
      %64 = vector.shape_cast %63 : vector<1x1x8x128xf32> to vector<8x128xf32>
      %65 = arith.addf %64, %44 : vector<8x128xf32>
      %c0_39 = arith.constant 0 : index
      %c3_40 = arith.constant 3 : index
      %c0_41 = arith.constant 0 : index
      %c0_42 = arith.constant 0 : index
      %66 = vector.load %arg4[%c0_39, %c3_40, %c0_41, %c0_42] : memref<1x4x8x128xf32, #tpu.memory_space<vmem>>, vector<1x1x8x128xf32>
      %67 = vector.shape_cast %66 : vector<1x1x8x128xf32> to vector<8x128xf32>
      %68 = vector.shape_cast %65 : vector<8x128xf32> to vector<1x1x8x128xf32>
      tpu.vector_store %arg4[%c0_39, %c3_40, %c0_41, %c0_42], %68 {strides = array<i32>} : memref<1x4x8x128xf32, #tpu.memory_space<vmem>>, vector<1x1x8x128xf32>,
    } else {
    }
    %9 = arith.extui %5 : i1 to i32
    %c0_i32_3 = arith.constant 0 : i32
    %10 = arith.cmpi ne, %9, %c0_i32_3 : i32
    scf.if %10 {
      %cst = arith.constant 0.000000e+00 : f32
      %11 = vector.broadcast %cst : f32 to vector<8x128xf32>
      %c0_i32_4 = arith.constant 0 : i32
      %c64_i32 = arith.constant 64 : i32
      %12 = arith.muli %c0_i32_4, %c64_i32 : i32
      %13 = tpu.assume_multiple %12, 64 : i32
      %14 = arith.index_cast %13 : i32 to index
      %c0 = arith.constant 0 : index
      %15 = vector.load %arg2[%14, %c0] : memref<64x128xf32, #tpu.memory_space<vmem>>, vector<64x128xf32>
      %16 = arith.index_cast %13 : i32 to index
      %c0_5 = arith.constant 0 : index
      %17 = vector.load %arg3[%16, %c0_5] : memref<64x128xf32, #tpu.memory_space<vmem>>, vector<64x128xf32>
      %c64_i32_6 = arith.constant 64 : i32
      %18 = arith.muli %1, %c64_i32_6 : i32
      %19 = arith.addi %18, %13 : i32
      %c128_i32 = arith.constant 128 : i32
      %20 = arith.muli %19, %c128_i32 : i32
      %21 = tpu.iota {dimensions = array<i32: 0>} : vector<64x128xi32>
      %22 = tpu.iota {dimensions = array<i32: 1>} : vector<64x128xi32>
      %c128_i32_7 = arith.constant 128 : i32
      %23 = vector.broadcast %c128_i32_7 : i32 to vector<64x128xi32>
      %24 = arith.muli %21, %23 : vector<64x128xi32>
      %25 = vector.broadcast %20 : i32 to vector<64x128xi32>
      %26 = arith.addi %25, %24 : vector<64x128xi32>
      %27 = arith.addi %26, %22 : vector<64x128xi32>
      %c2048_i32 = arith.constant 2048 : i32
      %28 = vector.broadcast %c2048_i32 : i32 to vector<64x128xi32>
      %29 = arith.cmpi slt, %27, %28 : vector<64x128xi32>
      %cst_8 = arith.constant 0.000000e+00 : f32
      %30 = vector.broadcast %cst_8 : f32 to vector<64x128xf32>
      %31 = arith.select %29, %15, %30 : vector<64x128xi1>, vector<64x128xf32>
      %cst_9 = arith.constant 0.000000e+00 : f32
      %32 = vector.broadcast %cst_9 : f32 to vector<64x128xf32>
      %33 = arith.select %29, %17, %32 : vector<64x128xi1>, vector<64x128xf32>
      %cst_10 = arith.constant 0.000000e+00 : f32
      %34 = vector.broadcast %cst_10 : f32 to vector<64x128xf32>
      %35 = arith.maximumf %31, %34 : vector<64x128xf32>
      %36 = arith.mulf %31, %33 : vector<64x128xf32>
      %37 = arith.subf %35, %36 : vector<64x128xf32>
      %38 = math.absf %31 : vector<64x128xf32>
      %cst_11 = arith.constant 0.000000e+00 : f32
      %39 = vector.broadcast %cst_11 : f32 to vector<64x128xf32>
      %40 = arith.subf %39, %38 : vector<64x128xf32>
      %41 = math.exp %40 : vector<64x128xf32>
      %42 = math.log1p %41 : vector<64x128xf32>
      %43 = arith.addf %37, %42 : vector<64x128xf32>
      %cst_12 = arith.constant 0.000000e+00 : f32
      %44 = vector.broadcast %cst_12 : f32 to vector<64x128xf32>
      %45 = arith.cmpf ogt, %31, %44 : vector<64x128xf32>
      %46 = arith.extui %45 : vector<64x128xi1> to vector<64x128xi32>
      %47 = arith.sitofp %46 : vector<64x128xi32> to vector<64x128xf32>
      %cst_13 = arith.constant 0.000000e+00 : f32
      %48 = vector.broadcast %cst_13 : f32 to vector<64x128xf32>
      %49 = arith.select %29, %43, %48 : vector<64x128xi1>, vector<64x128xf32>
      %cst_14 = arith.constant 0.000000e+00 : f32
      %50 = vector.broadcast %cst_14 : f32 to vector<64x128xf32>
      %51 = arith.select %29, %47, %50 : vector<64x128xi1>, vector<64x128xf32>
      %52 = vector.shape_cast %49 : vector<64x128xf32> to vector<8x8x128xf32>
      %cst_15 = arith.constant dense<0.000000e+00> : vector<8x128xf32>
      %53 = vector.multi_reduction <add>, %52, %cst_15 [0] : vector<8x8x128xf32> to vector<8x128xf32>
      %54 = arith.mulf %51, %33 : vector<64x128xf32>
      %55 = vector.shape_cast %54 : vector<64x128xf32> to vector<8x8x128xf32>
      %cst_16 = arith.constant dense<0.000000e+00> : vector<8x128xf32>
      %56 = vector.multi_reduction <add>, %55, %cst_16 [0] : vector<8x8x128xf32> to vector<8x128xf32>
      %57 = vector.shape_cast %51 : vector<64x128xf32> to vector<8x8x128xf32>
      %cst_17 = arith.constant dense<0.000000e+00> : vector<8x128xf32>
      %58 = vector.multi_reduction <add>, %57, %cst_17 [0] : vector<8x8x128xf32> to vector<8x128xf32>
      %59 = vector.shape_cast %33 : vector<64x128xf32> to vector<8x8x128xf32>
      %cst_18 = arith.constant dense<0.000000e+00> : vector<8x128xf32>
      %60 = vector.multi_reduction <add>, %59, %cst_18 [0] : vector<8x8x128xf32> to vector<8x128xf32>
      %61 = arith.addf %11, %53 : vector<8x128xf32>
      %62 = arith.addf %11, %56 : vector<8x128xf32>
      %63 = arith.addf %11, %58 : vector<8x128xf32>
      %64 = arith.addf %11, %60 : vector<8x128xf32>
      %c1_i32_19 = arith.constant 1 : i32
      %c0_20 = arith.constant 0 : index
      %c0_21 = arith.constant 0 : index
      %c0_22 = arith.constant 0 : index
      %c0_23 = arith.constant 0 : index
      %65 = vector.load %arg4[%c0_20, %c0_21, %c0_22, %c0_23] : memref<1x4x8x128xf32, #tpu.memory_space<vmem>>, vector<1x1x8x128xf32>
      %66 = vector.shape_cast %65 : vector<1x1x8x128xf32> to vector<8x128xf32>
      %67 = arith.addf %66, %61 : vector<8x128xf32>
      %c0_24 = arith.constant 0 : index
      %c0_25 = arith.constant 0 : index
      %c0_26 = arith.constant 0 : index
      %c0_27 = arith.constant 0 : index
      %68 = vector.load %arg4[%c0_24, %c0_25, %c0_26, %c0_27] : memref<1x4x8x128xf32, #tpu.memory_space<vmem>>, vector<1x1x8x128xf32>
      %69 = vector.shape_cast %68 : vector<1x1x8x128xf32> to vector<8x128xf32>
      %70 = vector.shape_cast %67 : vector<8x128xf32> to vector<1x1x8x128xf32>
      tpu.vector_store %arg4[%c0_24, %c0_25, %c0_26, %c0_27], %70 {strides = array<i32>} : memref<1x4x8x128xf32, #tpu.memory_space<vmem>>, vector<1x1x8x128xf32>,
      %c0_28 = arith.constant 0 : index
      %c1 = arith.constant 1 : index
      %c0_29 = arith.constant 0 : index
      %c0_30 = arith.constant 0 : index
      %71 = vector.load %arg4[%c0_28, %c1, %c0_29, %c0_30] : memref<1x4x8x128xf32, #tpu.memory_space<vmem>>, vector<1x1x8x128xf32>
      %72 = vector.shape_cast %71 : vector<1x1x8x128xf32> to vector<8x128xf32>
      %73 = arith.addf %72, %62 : vector<8x128xf32>
      %c0_31 = arith.constant 0 : index
      %c1_32 = arith.constant 1 : index
      %c0_33 = arith.constant 0 : index
      %c0_34 = arith.constant 0 : index
      %74 = vector.load %arg4[%c0_31, %c1_32, %c0_33, %c0_34] : memref<1x4x8x128xf32, #tpu.memory_space<vmem>>, vector<1x1x8x128xf32>
      %75 = vector.shape_cast %74 : vector<1x1x8x128xf32> to vector<8x128xf32>
      %76 = vector.shape_cast %73 : vector<8x128xf32> to vector<1x1x8x128xf32>
      tpu.vector_store %arg4[%c0_31, %c1_32, %c0_33, %c0_34], %76 {strides = array<i32>} : memref<1x4x8x128xf32, #tpu.memory_space<vmem>>, vector<1x1x8x128xf32>,
      %c0_35 = arith.constant 0 : index
      %c2 = arith.constant 2 : index
      %c0_36 = arith.constant 0 : index
      %c0_37 = arith.constant 0 : index
      %77 = vector.load %arg4[%c0_35, %c2, %c0_36, %c0_37] : memref<1x4x8x128xf32, #tpu.memory_space<vmem>>, vector<1x1x8x128xf32>
      %78 = vector.shape_cast %77 : vector<1x1x8x128xf32> to vector<8x128xf32>
      %79 = arith.addf %78, %63 : vector<8x128xf32>
      %c0_38 = arith.constant 0 : index
      %c2_39 = arith.constant 2 : index
      %c0_40 = arith.constant 0 : index
      %c0_41 = arith.constant 0 : index
      %80 = vector.load %arg4[%c0_38, %c2_39, %c0_40, %c0_41] : memref<1x4x8x128xf32, #tpu.memory_space<vmem>>, vector<1x1x8x128xf32>
      %81 = vector.shape_cast %80 : vector<1x1x8x128xf32> to vector<8x128xf32>
      %82 = vector.shape_cast %79 : vector<8x128xf32> to vector<1x1x8x128xf32>
      tpu.vector_store %arg4[%c0_38, %c2_39, %c0_40, %c0_41], %82 {strides = array<i32>} : memref<1x4x8x128xf32, #tpu.memory_space<vmem>>, vector<1x1x8x128xf32>,
      %c0_42 = arith.constant 0 : index
      %c3 = arith.constant 3 : index
      %c0_43 = arith.constant 0 : index
      %c0_44 = arith.constant 0 : index
      %83 = vector.load %arg4[%c0_42, %c3, %c0_43, %c0_44] : memref<1x4x8x128xf32, #tpu.memory_space<vmem>>, vector<1x1x8x128xf32>
      %84 = vector.shape_cast %83 : vector<1x1x8x128xf32> to vector<8x128xf32>
      %85 = arith.addf %84, %64 : vector<8x128xf32>
      %c0_45 = arith.constant 0 : index
      %c3_46 = arith.constant 3 : index
      %c0_47 = arith.constant 0 : index
      %c0_48 = arith.constant 0 : index
      %86 = vector.load %arg4[%c0_45, %c3_46, %c0_47, %c0_48] : memref<1x4x8x128xf32, #tpu.memory_space<vmem>>, vector<1x1x8x128xf32>
      %87 = vector.shape_cast %86 : vector<1x1x8x128xf32> to vector<8x128xf32>
      %88 = vector.shape_cast %85 : vector<8x128xf32> to vector<1x1x8x128xf32>
      tpu.vector_store %arg4[%c0_45, %c3_46, %c0_47, %c0_48], %88 {strides = array<i32>} : memref<1x4x8x128xf32, #tpu.memory_space<vmem>>, vector<1x1x8x128xf32>,
    } else {
    }
    return
  }
  func.func @transform_0(%arg0: i32, %arg1: i32) -> (i32, i32) {
    %c1_i32 = arith.constant 1 : i32
    %0 = arith.muli %arg0, %c1_i32 : i32
    %1 = arith.addi %0, %arg1 : i32
    %c0_i32 = arith.constant 0 : i32
    %2 = arith.minsi %1, %c0_i32 : i32
    %c0_i32_0 = arith.constant 0 : i32
    %c0_i32_1 = arith.constant 0 : i32
    return %2, %c0_i32_0 : i32, i32
  }
  func.func @transform_1(%arg0: i32, %arg1: i32) -> (i32, i32) {
    %c1_i32 = arith.constant 1 : i32
    %0 = arith.muli %arg0, %c1_i32 : i32
    %1 = arith.addi %0, %arg1 : i32
    %c0_i32 = arith.constant 0 : i32
    %2 = arith.minsi %1, %c0_i32 : i32
    %c0_i32_0 = arith.constant 0 : i32
    %c0_i32_1 = arith.constant 0 : i32
    return %2, %c0_i32_0 : i32, i32
  }
  func.func @transform_2(%arg0: i32, %arg1: i32) -> (i32, i32, i32, i32) {
    %c0_i32 = arith.constant 0 : i32
    %c0_i32_0 = arith.constant 0 : i32
    %c0_i32_1 = arith.constant 0 : i32
    %c0_i32_2 = arith.constant 0 : i32
    return %arg0, %c0_i32, %c0_i32_0, %c0_i32_1 : i32, i32, i32, i32
  }
}

</mosaic_0001>

<llo_original>
// kernel: tpu_custom_call.1
$region0: #{tpu_custom_call.1}
  #allocation0 [shape = 'u32[]', space=smem, size = 0x4, offset = 0x4, fixed_abs, tag = 'smem constant byte address 0x4 - core index']
  #allocation1 [shape = 'u32[144,128]{1,0:T(1,128)}', space=vmem, size = 0x12000, scoped, tag = 'internal scratch']
  %s0 = inlined_call_operand.hbm [shape: f32[16,128], index: 0, kind: input, shape index: {}]
  %s1 = inlined_call_operand.hbm [shape: f32[16,128], index: 1, kind: input, shape index: {}]
  %s2 = inlined_call_operand.hbm [shape: f32[1,4,8,128], index: 2, kind: output, shape index: {}]
  %s3 = sld [smem:[#allocation0]]
  $region38: #{tpu_custom_call.1} parent=0
    _
  %s5 = ssub.s32 1, %s3
  %s6 = scalar_select 0, %s5, %s3
  $region1: #{tpu_custom_call.1} parent=0
    #allocation2 [shape = 'u8[32768]{0}', space=vmem, size = 0x8000, scoped, tag = 'input window, operand 0, single buffered']
    #allocation3 [shape = 's32[1]{0}', space=sflag, size = 0x4, scoped, tag = 'scoped memory for tpu_custom_call.1']
    #allocation4 [shape = 's32[1]{0}', space=sflag, size = 0x4, scoped, tag = 'scoped memory for tpu_custom_call.1']
    #allocation5 [shape = 'u8[32768]{0}', space=vmem, size = 0x8000, scoped, tag = 'input window, operand 1, single buffered']
    #allocation6 [shape = 's32[1]{0}', space=sflag, size = 0x4, scoped, tag = 'scoped memory for tpu_custom_call.1']
    #allocation7 [shape = 'u8[16384]{0}', space=vmem, size = 0x4000, scoped, tag = 'output window, operand 0, single buffered']
    %7 = vsyncpa [#allocation3], 0
    %8 = vsyncpa [#allocation6], 0
    %9 = vsyncpa [#allocation4], 0
    // Predicated region
    $region2: #{tpu_custom_call.1} parent=1 // pred_check
      _
    $region3: #{tpu_custom_call.1} parent=1 // pred_check_branch
      %11 = sbr.rel (0) target = $region5
    $region4: #{tpu_custom_call.1} parent=1 // pred_region
      %s12 = sadd.s32 0, 0
      %p13 = scmp.lt.s32.totalorder %s12, 0
      %s14 = scalar_select %p13, %s12, 0
      %s15 = smul.u32 8, %s14
      %s16 = ssub.s32 2, %s15
      %s17 = smul.u32 128, %s16
      %s19 = ssub.s32 1024, %s17
      %20 = vsyncadd [#allocation3], %s19
      %p21 = scmp.ne.s32.totalorder 0, %s17
      %s22 = smul.addr %s15, 128
      %s23 = scalar_lea.hbm %s0, %s22
      %s24 = smul.u32 8, %s16
      %s25 = sshll.u32 [#allocation2], 4
      %s26 = int_to_ptr.vmem [resolvable:$true] %s25
      %s27 = sshll.u32 %s24, 4
      %31 = dma.hbm_to_vmem [thread:$0]  (%p21), %s23, %s27, %s26, [#allocation3], 128, 128, 8
    $region5: #{tpu_custom_call.1} parent=1 // pred_fallthru
      _
    // Predicated region
    $region6: #{tpu_custom_call.1} parent=1 // pred_check
      _
    $region7: #{tpu_custom_call.1} parent=1 // pred_check_branch
      %33 = sbr.rel (0) target = $region9
    $region8: #{tpu_custom_call.1} parent=1 // pred_region
      %s34 = sadd.s32 0, 0
      %p35 = scmp.lt.s32.totalorder %s34, 0
      %s36 = scalar_select %p35, %s34, 0
      %s37 = smul.u32 8, %s36
      %s38 = ssub.s32 2, %s37
      %s39 = smul.u32 128, %s38
      %s41 = ssub.s32 1024, %s39
      %42 = vsyncadd [#allocation6], %s41
      %p43 = scmp.ne.s32.totalorder 0, %s39
      %s44 = smul.addr %s37, 128
      %s45 = scalar_lea.hbm %s1, %s44
      %s46 = smul.u32 8, %s38
      %s47 = sshll.u32 [#allocation5], 4
      %s48 = int_to_ptr.vmem [resolvable:$true] %s47
      %s49 = sshll.u32 %s46, 4
      %53 = dma.hbm_to_vmem [thread:$0]  (%p43), %s45, %s49, %s48, [#allocation6], 128, 128, 8
    $region9: #{tpu_custom_call.1} parent=1 // pred_fallthru
      _
    // Predicated region
    $region10: #{tpu_custom_call.1} parent=1 // pred_check
      _
    $region11: #{tpu_custom_call.1} parent=1 // pred_check_branch
      %55 = sbr.rel (0) target = $region13
    $region12: #{tpu_custom_call.1} parent=1 // pred_region
      %56 = dma.done [#allocation3], 1024
    $region13: #{tpu_custom_call.1} parent=1 // pred_fallthru
      _
    // Predicated region
    $region14: #{tpu_custom_call.1} parent=1 // pred_check
      _
    $region15: #{tpu_custom_call.1} parent=1 // pred_check_branch
      %58 = sbr.rel (0) target = $region17
    $region16: #{tpu_custom_call.1} parent=1 // pred_region
      %59 = dma.done [#allocation6], 1024
    $region17: #{tpu_custom_call.1} parent=1 // pred_fallthru
      _
    %s60 = sadd.s32 0, 0
    %p61 = scmp.lt.s32.totalorder %s60, 0
    %s62 = scalar_select %p61, %s60, 0
    %s63 = smul.u32 8, %s62
    %s64 = ssub.s32 2, %s63
    %s65 = smul.u32 128, %s64
    %s66 = sadd.s32 0, 0
    %p67 = scmp.lt.s32.totalorder %s66, 0
    %s68 = scalar_select %p67, %s66, 0
    %s69 = smul.u32 8, %s68
    %s70 = ssub.s32 2, %s69
    %s71 = smul.u32 128, %s70
    %s72 = sadd.s32 0, 0
    %p73 = scmp.eq.s32.totalorder 0, 0
    // Predicated region
    $region18: #{tpu_custom_call.1} parent=1 // pred_check
      %p74 = pneg %p73
    $region19: #{tpu_custom_call.1} parent=1 // pred_check_branch
      %76 = sbr.rel (%p74) target = $region21
    $region20: #{tpu_custom_call.1} parent=1 // pred_region
      %77 = vst [vmem:[#allocation7] sm:$0xff] 0.0
      %78 = vst [vmem:[#allocation7 + $0x8] sm:$0xff] 0.0
      %79 = vst [vmem:[#allocation7 + $0x10] sm:$0xff] 0.0
      %80 = vst [vmem:[#allocation7 + $0x18] sm:$0xff] 0.0
    $region21: #{tpu_custom_call.1} parent=1 // pred_fallthru
      _
    %p81 = scmp.ge.s32.totalorder %s72, 0
    %p82 = scmp.lt.s32.totalorder %s72, 0
    // Predicated region
    $region22: #{tpu_custom_call.1} parent=1 // pred_check
      %p83 = pneg %p82
    $region23: #{tpu_custom_call.1} parent=1 // pred_check_branch
      %85 = sbr.rel (%p83) target = $region25
    $region24: #{tpu_custom_call.1} parent=1 // pred_region
      %v86 = vld [vmem:[#allocation2] sm:$0xff]
      %v87 = vld [vmem:[#allocation2 + $0x8] sm:$0xff]
      %v88 = vld [vmem:[#allocation2 + $0x10] sm:$0xff]
      %v89 = vld [vmem:[#allocation2 + $0x18] sm:$0xff]
      %v90 = vld [vmem:[#allocation2 + $0x20] sm:$0xff]
      %v91 = vld [vmem:[#allocation2 + $0x28] sm:$0xff]
      %v92 = vld [vmem:[#allocation2 + $0x30] sm:$0xff]
      %v93 = vld [vmem:[#allocation2 + $0x38] sm:$0xff]
      %v94 = vld [vmem:[#allocation5] sm:$0xff]
      %v95 = vld [vmem:[#allocation5 + $0x8] sm:$0xff]
      %v96 = vld [vmem:[#allocation5 + $0x10] sm:$0xff]
      %v97 = vld [vmem:[#allocation5 + $0x18] sm:$0xff]
      %v98 = vld [vmem:[#allocation5 + $0x20] sm:$0xff]
      %v99 = vld [vmem:[#allocation5 + $0x28] sm:$0xff]
      %v100 = vld [vmem:[#allocation5 + $0x30] sm:$0xff]
      %v101 = vld [vmem:[#allocation5 + $0x38] sm:$0xff]
      %v102 = vmax.f32 %v86, 0.0
      %v103 = vmax.f32 %v87, 0.0
      %v104 = vmax.f32 %v88, 0.0
      %v105 = vmax.f32 %v89, 0.0
      %v106 = vmax.f32 %v90, 0.0
      %v107 = vmax.f32 %v91, 0.0
      %v108 = vmax.f32 %v92, 0.0
      %v109 = vmax.f32 %v93, 0.0
      %v110 = vmul.f32 %v86, %v94
      %v111 = vmul.f32 %v87, %v95
      %v112 = vmul.f32 %v88, %v96
      %v113 = vmul.f32 %v89, %v97
      %v114 = vmul.f32 %v90, %v98
      %v115 = vmul.f32 %v91, %v99
      %v116 = vmul.f32 %v92, %v100
      %v117 = vmul.f32 %v93, %v101
      %v118 = vsub.f32 %v102, %v110
      %v119 = vsub.f32 %v103, %v111
      %v120 = vsub.f32 %v104, %v112
      %v121 = vsub.f32 %v105, %v113
      %v122 = vsub.f32 %v106, %v114
      %v123 = vsub.f32 %v107, %v115
      %v124 = vsub.f32 %v108, %v116
      %v125 = vsub.f32 %v109, %v117
      %v126 = vand.u32 2147483647, %v86
      %v127 = vand.u32 2147483647, %v87
      %v128 = vand.u32 2147483647, %v88
      %v129 = vand.u32 2147483647, %v89
      %v130 = vand.u32 2147483647, %v90
      %v131 = vand.u32 2147483647, %v91
      %v132 = vand.u32 2147483647, %v92
      %v133 = vand.u32 2147483647, %v93
      %v134 = vsub.f32 0.0, %v126
      %v135 = vsub.f32 0.0, %v127
      %v136 = vsub.f32 0.0, %v128
      %v137 = vsub.f32 0.0, %v129
      %v138 = vsub.f32 0.0, %v130
      %v139 = vsub.f32 0.0, %v131
      %v140 = vsub.f32 0.0, %v132
      %v141 = vsub.f32 0.0, %v133
      %v142 = vmul.f32 %v134, 1.442695
      %v143 = vpow.pop %v142
      %v144 = vmul.f32 %v135, 1.442695
      %v145 = vpow.pop %v144
      %v146 = vmul.f32 %v136, 1.442695
      %v147 = vpow.pop %v146
      %v148 = vmul.f32 %v137, 1.442695
      %v149 = vpow.pop %v148
      %v150 = vmul.f32 %v138, 1.442695
      %v151 = vpow.pop %v150
      %v152 = vmul.f32 %v139, 1.442695
      %v153 = vpow.pop %v152
      %v154 = vmul.f32 %v140, 1.442695
      %v155 = vpow.pop %v154
      %v156 = vmul.f32 %v141, 1.442695
      %v157 = vpow.pop %v156
      %v158 = vadd.f32 %v143, 1.0
      %v159 = vlog2.pop %v158
      %v160 = vmul.f32 %v159, 0.6931472
      %v161 = vmul.f32 -0.5, %v143
      %v162 = vadd.f32 %v161, 1.0
      %v163 = vmul.f32 %v162, %v143
      %v164 = vand.u32 2147483647, %v143
      %vm165 = vcmp.lt.f32.partialorder %v164, 0.0004427343
      %v166 = vsel %vm165, %v163, %v160
      %v167 = vadd.f32 %v145, 1.0
      %v168 = vlog2.pop %v167
      %v169 = vmul.f32 %v168, 0.6931472
      %v170 = vmul.f32 -0.5, %v145
      %v171 = vadd.f32 %v170, 1.0
      %v172 = vmul.f32 %v171, %v145
      %v173 = vand.u32 2147483647, %v145
      %vm174 = vcmp.lt.f32.partialorder %v173, 0.0004427343
      %v175 = vsel %vm174, %v172, %v169
      %v176 = vadd.f32 %v147, 1.0
      %v177 = vlog2.pop %v176
      %v178 = vmul.f32 %v177, 0.6931472
      %v179 = vmul.f32 -0.5, %v147
      %v180 = vadd.f32 %v179, 1.0
      %v181 = vmul.f32 %v180, %v147
      %v182 = vand.u32 2147483647, %v147
      %vm183 = vcmp.lt.f32.partialorder %v182, 0.0004427343
      %v184 = vsel %vm183, %v181, %v178
      %v185 = vadd.f32 %v149, 1.0
      %v186 = vlog2.pop %v185
      %v187 = vmul.f32 %v186, 0.6931472
      %v188 = vmul.f32 -0.5, %v149
      %v189 = vadd.f32 %v188, 1.0
      %v190 = vmul.f32 %v189, %v149
      %v191 = vand.u32 2147483647, %v149
      %vm192 = vcmp.lt.f32.partialorder %v191, 0.0004427343
      %v193 = vsel %vm192, %v190, %v187
      %v194 = vadd.f32 %v151, 1.0
      %v195 = vlog2.pop %v194
      %v196 = vmul.f32 %v195, 0.6931472
      %v197 = vmul.f32 -0.5, %v151
      %v198 = vadd.f32 %v197, 1.0
      %v199 = vmul.f32 %v198, %v151
      %v200 = vand.u32 2147483647, %v151
      %vm201 = vcmp.lt.f32.partialorder %v200, 0.0004427343
      %v202 = vsel %vm201, %v199, %v196
      %v203 = vadd.f32 %v153, 1.0
      %v204 = vlog2.pop %v203
      %v205 = vmul.f32 %v204, 0.6931472
      %v206 = vmul.f32 -0.5, %v153
      %v207 = vadd.f32 %v206, 1.0
      %v208 = vmul.f32 %v207, %v153
      %v209 = vand.u32 2147483647, %v153
      %vm210 = vcmp.lt.f32.partialorder %v209, 0.0004427343
      %v211 = vsel %vm210, %v208, %v205
      %v212 = vadd.f32 %v155, 1.0
      %v213 = vlog2.pop %v212
      %v214 = vmul.f32 %v213, 0.6931472
      %v215 = vmul.f32 -0.5, %v155
      %v216 = vadd.f32 %v215, 1.0
      %v217 = vmul.f32 %v216, %v155
      %v218 = vand.u32 2147483647, %v155
      %vm219 = vcmp.lt.f32.partialorder %v218, 0.0004427343
      %v220 = vsel %vm219, %v217, %v214
      %v221 = vadd.f32 %v157, 1.0
      %v222 = vlog2.pop %v221
      %v223 = vmul.f32 %v222, 0.6931472
      %v224 = vmul.f32 -0.5, %v157
      %v225 = vadd.f32 %v224, 1.0
      %v226 = vmul.f32 %v225, %v157
      %v227 = vand.u32 2147483647, %v157
      %vm228 = vcmp.lt.f32.partialorder %v227, 0.0004427343
      %v229 = vsel %vm228, %v226, %v223
      %v230 = vadd.f32 %v118, %v166
      %v231 = vadd.f32 %v119, %v175
      %v232 = vadd.f32 %v120, %v184
      %v233 = vadd.f32 %v121, %v193
      %v234 = vadd.f32 %v122, %v202
      %v235 = vadd.f32 %v123, %v211
      %v236 = vadd.f32 %v124, %v220
      %v237 = vadd.f32 %v125, %v229
      %vm238 = vcmp.gt.f32.partialorder %v86, 0.0
      %vm239 = vcmp.gt.f32.partialorder %v87, 0.0
      %vm240 = vcmp.gt.f32.partialorder %v88, 0.0
      %vm241 = vcmp.gt.f32.partialorder %v89, 0.0
      %vm242 = vcmp.gt.f32.partialorder %v90, 0.0
      %vm243 = vcmp.gt.f32.partialorder %v91, 0.0
      %vm244 = vcmp.gt.f32.partialorder %v92, 0.0
      %vm245 = vcmp.gt.f32.partialorder %v93, 0.0
      %v246 = vsel %vm238, 1, 0
      %v247 = vsel %vm239, 1, 0
      %v248 = vsel %vm240, 1, 0
      %v249 = vsel %vm241, 1, 0
      %v250 = vsel %vm242, 1, 0
      %v251 = vsel %vm243, 1, 0
      %v252 = vsel %vm244, 1, 0
      %v253 = vsel %vm245, 1, 0
      %v254 = vcvt.s32.f32 %v246
      %v255 = vcvt.s32.f32 %v247
      %v256 = vcvt.s32.f32 %v248
      %v257 = vcvt.s32.f32 %v249
      %v258 = vcvt.s32.f32 %v250
      %v259 = vcvt.s32.f32 %v251
      %v260 = vcvt.s32.f32 %v252
      %v261 = vcvt.s32.f32 %v253
      %v262 = vadd.f32 %v230, %v231
      %v263 = vadd.f32 %v262, %v232
      %v264 = vadd.f32 %v263, %v233
      %v265 = vadd.f32 %v264, %v234
      %v266 = vadd.f32 %v265, %v235
      %v267 = vadd.f32 %v266, %v236
      %v268 = vadd.f32 %v267, %v237
      %v269 = vmul.f32 %v254, %v94
      %v270 = vmul.f32 %v255, %v95
      %v271 = vmul.f32 %v256, %v96
      %v272 = vmul.f32 %v257, %v97
      %v273 = vmul.f32 %v258, %v98
      %v274 = vmul.f32 %v259, %v99
      %v275 = vmul.f32 %v260, %v100
      %v276 = vmul.f32 %v261, %v101
      %v277 = vadd.f32 %v269, %v270
      %v278 = vadd.f32 %v277, %v271
      %v279 = vadd.f32 %v278, %v272
      %v280 = vadd.f32 %v279, %v273
      %v281 = vadd.f32 %v280, %v274
      %v282 = vadd.f32 %v281, %v275
      %v283 = vadd.f32 %v282, %v276
      %v284 = vadd.f32 %v254, %v255
      %v285 = vadd.f32 %v284, %v256
      %v286 = vadd.f32 %v285, %v257
      %v287 = vadd.f32 %v286, %v258
      %v288 = vadd.f32 %v287, %v259
      %v289 = vadd.f32 %v288, %v260
      %v290 = vadd.f32 %v289, %v261
      %v291 = vadd.f32 %v94, %v95
      %v292 = vadd.f32 %v291, %v96
      %v293 = vadd.f32 %v292, %v97
      %v294 = vadd.f32 %v293, %v98
      %v295 = vadd.f32 %v294, %v99
      %v296 = vadd.f32 %v295, %v100
      %v297 = vadd.f32 %v296, %v101
      %v298 = vadd.f32 %v268, 0.0
      %v299 = vadd.f32 %v283, 0.0
      %v300 = vadd.f32 %v290, 0.0
      %v301 = vadd.f32 %v297, 0.0
      %v302 = vld [vmem:[#allocation7] sm:$0xff]
      %v303 = vadd.f32 %v302, %v298
      %304 = vst [vmem:[#allocation7] sm:$0xff] %v303
      %s305 = scalar_lea.vmem [#allocation7], 8
      %v306 = vld [vmem:[%s305] sm:$0xff]
      %v307 = vadd.f32 %v306, %v299
      %308 = vst [vmem:[%s305] sm:$0xff] %v307
      %s309 = scalar_lea.vmem [#allocation7], 16
      %v310 = vld [vmem:[%s309] sm:$0xff]
      %v311 = vadd.f32 %v310, %v300
      %312 = vst [vmem:[%s309] sm:$0xff] %v311
      %s313 = scalar_lea.vmem [#allocation7], 24
      %v314 = vld [vmem:[%s313] sm:$0xff]
      %v315 = vadd.f32 %v314, %v301
      %316 = vst [vmem:[%s313] sm:$0xff] %v315
    $region25: #{tpu_custom_call.1} parent=1 // pred_fallthru
      _
    // Predicated region
    $region26: #{tpu_custom_call.1} parent=1 // pred_check
      %p317 = pneg %p81
    $region27: #{tpu_custom_call.1} parent=1 // pred_check_branch
      %319 = sbr.rel (%p317) target = $region29
    $region28: #{tpu_custom_call.1} parent=1 // pred_region
      %v320 = vld [vmem:[#allocation2] sm:$0xff]
      %v321 = vld [vmem:[#allocation2 + $0x8] sm:$0xff]
      %v322 = vld [vmem:[#allocation2 + $0x10] sm:$0xff]
      %v323 = vld [vmem:[#allocation2 + $0x18] sm:$0xff]
      %v324 = vld [vmem:[#allocation2 + $0x20] sm:$0xff]
      %v325 = vld [vmem:[#allocation2 + $0x28] sm:$0xff]
      %v326 = vld [vmem:[#allocation2 + $0x30] sm:$0xff]
      %v327 = vld [vmem:[#allocation2 + $0x38] sm:$0xff]
      %v328 = vld [vmem:[#allocation5] sm:$0xff]
      %v329 = vld [vmem:[#allocation5 + $0x8] sm:$0xff]
      %v330 = vld [vmem:[#allocation5 + $0x10] sm:$0xff]
      %v331 = vld [vmem:[#allocation5 + $0x18] sm:$0xff]
      %v332 = vld [vmem:[#allocation5 + $0x20] sm:$0xff]
      %v333 = vld [vmem:[#allocation5 + $0x28] sm:$0xff]
      %v334 = vld [vmem:[#allocation5 + $0x30] sm:$0xff]
      %v335 = vld [vmem:[#allocation5 + $0x38] sm:$0xff]
      %s336 = smul.u32 %s72, 64
      %s337 = sadd.s32 %s336, 0
      %s338 = smul.u32 %s337, 128
      %v339 = vlaneseq
      %v340 = vshrl.u32 %v339, 7
      %v341 = vadd.s32 %v340, 8
      %v342 = vadd.s32 %v340, 16
      %v343 = vadd.s32 %v340, 24
      %v344 = vadd.s32 %v340, 32
      %v345 = vadd.s32 %v340, 40
      %v346 = vadd.s32 %v340, 48
      %v347 = vadd.s32 %v340, 56
      %v348 = vlaneseq
      %v349 = vand.u32 %v348, 127
      %v350 = vmul.u32 %v340, 128
      %v351 = vmul.u32 %v341, 128
      %v352 = vmul.u32 %v342, 128
      %v353 = vmul.u32 %v343, 128
      %v354 = vmul.u32 %v344, 128
      %v355 = vmul.u32 %v345, 128
      %v356 = vmul.u32 %v346, 128
      %v357 = vmul.u32 %v347, 128
      %v358 = vstv %s338
      %v359 = vadd.s32 %v358, %v350
      %v360 = vadd.s32 %v358, %v351
      %v361 = vadd.s32 %v358, %v352
      %v362 = vadd.s32 %v358, %v353
      %v363 = vadd.s32 %v358, %v354
      %v364 = vadd.s32 %v358, %v355
      %v365 = vadd.s32 %v358, %v356
      %v366 = vadd.s32 %v358, %v357
      %v367 = vadd.s32 %v359, %v349
      %v368 = vadd.s32 %v360, %v349
      %v369 = vadd.s32 %v361, %v349
      %v370 = vadd.s32 %v362, %v349
      %v371 = vadd.s32 %v363, %v349
      %v372 = vadd.s32 %v364, %v349
      %v373 = vadd.s32 %v365, %v349
      %v374 = vadd.s32 %v366, %v349
      %vm375 = vcmp.lt.s32.totalorder %v367, 2048
      %vm376 = vcmp.lt.s32.totalorder %v368, 2048
      %vm377 = vcmp.lt.s32.totalorder %v369, 2048
      %vm378 = vcmp.lt.s32.totalorder %v370, 2048
      %vm379 = vcmp.lt.s32.totalorder %v371, 2048
      %vm380 = vcmp.lt.s32.totalorder %v372, 2048
      %vm381 = vcmp.lt.s32.totalorder %v373, 2048
      %vm382 = vcmp.lt.s32.totalorder %v374, 2048
      %v383 = vsel %vm375, %v320, 0.0
      %v384 = vsel %vm376, %v321, 0.0
      %v385 = vsel %vm377, %v322, 0.0
      %v386 = vsel %vm378, %v323, 0.0
      %v387 = vsel %vm379, %v324, 0.0
      %v388 = vsel %vm380, %v325, 0.0
      %v389 = vsel %vm381, %v326, 0.0
      %v390 = vsel %vm382, %v327, 0.0
      %v391 = vsel %vm375, %v328, 0.0
      %v392 = vsel %vm376, %v329, 0.0
      %v393 = vsel %vm377, %v330, 0.0
      %v394 = vsel %vm378, %v331, 0.0
      %v395 = vsel %vm379, %v332, 0.0
      %v396 = vsel %vm380, %v333, 0.0
      %v397 = vsel %vm381, %v334, 0.0
      %v398 = vsel %vm382, %v335, 0.0
      %v399 = vmax.f32 %v383, 0.0
      %v400 = vmax.f32 %v384, 0.0
      %v401 = vmax.f32 %v385, 0.0
      %v402 = vmax.f32 %v386, 0.0
      %v403 = vmax.f32 %v387, 0.0
      %v404 = vmax.f32 %v388, 0.0
      %v405 = vmax.f32 %v389, 0.0
      %v406 = vmax.f32 %v390, 0.0
      %v407 = vmul.f32 %v383, %v391
      %v408 = vmul.f32 %v384, %v392
      %v409 = vmul.f32 %v385, %v393
      %v410 = vmul.f32 %v386, %v394
      %v411 = vmul.f32 %v387, %v395
      %v412 = vmul.f32 %v388, %v396
      %v413 = vmul.f32 %v389, %v397
      %v414 = vmul.f32 %v390, %v398
      %v415 = vsub.f32 %v399, %v407
      %v416 = vsub.f32 %v400, %v408
      %v417 = vsub.f32 %v401, %v409
      %v418 = vsub.f32 %v402, %v410
      %v419 = vsub.f32 %v403, %v411
      %v420 = vsub.f32 %v404, %v412
      %v421 = vsub.f32 %v405, %v413
      %v422 = vsub.f32 %v406, %v414
      %v423 = vand.u32 2147483647, %v383
      %v424 = vand.u32 2147483647, %v384
      %v425 = vand.u32 2147483647, %v385
      %v426 = vand.u32 2147483647, %v386
      %v427 = vand.u32 2147483647, %v387
      %v428 = vand.u32 2147483647, %v388
      %v429 = vand.u32 2147483647, %v389
      %v430 = vand.u32 2147483647, %v390
      %v431 = vsub.f32 0.0, %v423
      %v432 = vsub.f32 0.0, %v424
      %v433 = vsub.f32 0.0, %v425
      %v434 = vsub.f32 0.0, %v426
      %v435 = vsub.f32 0.0, %v427
      %v436 = vsub.f32 0.0, %v428
      %v437 = vsub.f32 0.0, %v429
      %v438 = vsub.f32 0.0, %v430
      %v439 = vmul.f32 %v431, 1.442695
      %v440 = vpow.pop %v439
      %v441 = vmul.f32 %v432, 1.442695
      %v442 = vpow.pop %v441
      %v443 = vmul.f32 %v433, 1.442695
      %v444 = vpow.pop %v443
      %v445 = vmul.f32 %v434, 1.442695
      %v446 = vpow.pop %v445
      %v447 = vmul.f32 %v435, 1.442695
      %v448 = vpow.pop %v447
      %v449 = vmul.f32 %v436, 1.442695
      %v450 = vpow.pop %v449
      %v451 = vmul.f32 %v437, 1.442695
      %v452 = vpow.pop %v451
      %v453 = vmul.f32 %v438, 1.442695
      %v454 = vpow.pop %v453
      %v455 = vadd.f32 %v440, 1.0
      %v456 = vlog2.pop %v455
      %v457 = vmul.f32 %v456, 0.6931472
      %v458 = vmul.f32 -0.5, %v440
      %v459 = vadd.f32 %v458, 1.0
      %v460 = vmul.f32 %v459, %v440
      %v461 = vand.u32 2147483647, %v440
      %vm462 = vcmp.lt.f32.partialorder %v461, 0.0004427343
      %v463 = vsel %vm462, %v460, %v457
      %v464 = vadd.f32 %v442, 1.0
      %v465 = vlog2.pop %v464
      %v466 = vmul.f32 %v465, 0.6931472
      %v467 = vmul.f32 -0.5, %v442
      %v468 = vadd.f32 %v467, 1.0
      %v469 = vmul.f32 %v468, %v442
      %v470 = vand.u32 2147483647, %v442
      %vm471 = vcmp.lt.f32.partialorder %v470, 0.0004427343
      %v472 = vsel %vm471, %v469, %v466
      %v473 = vadd.f32 %v444, 1.0
      %v474 = vlog2.pop %v473
      %v475 = vmul.f32 %v474, 0.6931472
      %v476 = vmul.f32 -0.5, %v444
      %v477 = vadd.f32 %v476, 1.0
      %v478 = vmul.f32 %v477, %v444
      %v479 = vand.u32 2147483647, %v444
      %vm480 = vcmp.lt.f32.partialorder %v479, 0.0004427343
      %v481 = vsel %vm480, %v478, %v475
      %v482 = vadd.f32 %v446, 1.0
      %v483 = vlog2.pop %v482
      %v484 = vmul.f32 %v483, 0.6931472
      %v485 = vmul.f32 -0.5, %v446
      %v486 = vadd.f32 %v485, 1.0
      %v487 = vmul.f32 %v486, %v446
      %v488 = vand.u32 2147483647, %v446
      %vm489 = vcmp.lt.f32.partialorder %v488, 0.0004427343
      %v490 = vsel %vm489, %v487, %v484
      %v491 = vadd.f32 %v448, 1.0
      %v492 = vlog2.pop %v491
      %v493 = vmul.f32 %v492, 0.6931472
      %v494 = vmul.f32 -0.5, %v448
      %v495 = vadd.f32 %v494, 1.0
      %v496 = vmul.f32 %v495, %v448
      %v497 = vand.u32 2147483647, %v448
      %vm498 = vcmp.lt.f32.partialorder %v497, 0.0004427343
      %v499 = vsel %vm498, %v496, %v493
      %v500 = vadd.f32 %v450, 1.0
      %v501 = vlog2.pop %v500
      %v502 = vmul.f32 %v501, 0.6931472
      %v503 = vmul.f32 -0.5, %v450
      %v504 = vadd.f32 %v503, 1.0
      %v505 = vmul.f32 %v504, %v450
      %v506 = vand.u32 2147483647, %v450
      %vm507 = vcmp.lt.f32.partialorder %v506, 0.0004427343
      %v508 = vsel %vm507, %v505, %v502
      %v509 = vadd.f32 %v452, 1.0
      %v510 = vlog2.pop %v509
      %v511 = vmul.f32 %v510, 0.6931472
      %v512 = vmul.f32 -0.5, %v452
      %v513 = vadd.f32 %v512, 1.0
      %v514 = vmul.f32 %v513, %v452
      %v515 = vand.u32 2147483647, %v452
      %vm516 = vcmp.lt.f32.partialorder %v515, 0.0004427343
      %v517 = vsel %vm516, %v514, %v511
      %v518 = vadd.f32 %v454, 1.0
      %v519 = vlog2.pop %v518
      %v520 = vmul.f32 %v519, 0.6931472
      %v521 = vmul.f32 -0.5, %v454
      %v522 = vadd.f32 %v521, 1.0
      %v523 = vmul.f32 %v522, %v454
      %v524 = vand.u32 2147483647, %v454
      %vm525 = vcmp.lt.f32.partialorder %v524, 0.0004427343
      %v526 = vsel %vm525, %v523, %v520
      %v527 = vadd.f32 %v415, %v463
      %v528 = vadd.f32 %v416, %v472
      %v529 = vadd.f32 %v417, %v481
      %v530 = vadd.f32 %v418, %v490
      %v531 = vadd.f32 %v419, %v499
      %v532 = vadd.f32 %v420, %v508
      %v533 = vadd.f32 %v421, %v517
      %v534 = vadd.f32 %v422, %v526
      %vm535 = vcmp.gt.f32.partialorder %v383, 0.0
      %vm536 = vcmp.gt.f32.partialorder %v384, 0.0
      %vm537 = vcmp.gt.f32.partialorder %v385, 0.0
      %vm538 = vcmp.gt.f32.partialorder %v386, 0.0
      %vm539 = vcmp.gt.f32.partialorder %v387, 0.0
      %vm540 = vcmp.gt.f32.partialorder %v388, 0.0
      %vm541 = vcmp.gt.f32.partialorder %v389, 0.0
      %vm542 = vcmp.gt.f32.partialorder %v390, 0.0
      %v543 = vsel %vm535, 1, 0
      %v544 = vsel %vm536, 1, 0
      %v545 = vsel %vm537, 1, 0
      %v546 = vsel %vm538, 1, 0
      %v547 = vsel %vm539, 1, 0
      %v548 = vsel %vm540, 1, 0
      %v549 = vsel %vm541, 1, 0
      %v550 = vsel %vm542, 1, 0
      %v551 = vcvt.s32.f32 %v543
      %v552 = vcvt.s32.f32 %v544
      %v553 = vcvt.s32.f32 %v545
      %v554 = vcvt.s32.f32 %v546
      %v555 = vcvt.s32.f32 %v547
      %v556 = vcvt.s32.f32 %v548
      %v557 = vcvt.s32.f32 %v549
      %v558 = vcvt.s32.f32 %v550
      %v559 = vsel %vm375, %v527, 0.0
      %v560 = vsel %vm376, %v528, 0.0
      %v561 = vsel %vm377, %v529, 0.0
      %v562 = vsel %vm378, %v530, 0.0
      %v563 = vsel %vm379, %v531, 0.0
      %v564 = vsel %vm380, %v532, 0.0
      %v565 = vsel %vm381, %v533, 0.0
      %v566 = vsel %vm382, %v534, 0.0
      %v567 = vsel %vm375, %v551, 0.0
      %v568 = vsel %vm376, %v552, 0.0
      %v569 = vsel %vm377, %v553, 0.0
      %v570 = vsel %vm378, %v554, 0.0
      %v571 = vsel %vm379, %v555, 0.0
      %v572 = vsel %vm380, %v556, 0.0
      %v573 = vsel %vm381, %v557, 0.0
      %v574 = vsel %vm382, %v558, 0.0
      %v575 = vadd.f32 %v559, %v560
      %v576 = vadd.f32 %v575, %v561
      %v577 = vadd.f32 %v576, %v562
      %v578 = vadd.f32 %v577, %v563
      %v579 = vadd.f32 %v578, %v564
      %v580 = vadd.f32 %v579, %v565
      %v581 = vadd.f32 %v580, %v566
      %v582 = vmul.f32 %v567, %v391
      %v583 = vmul.f32 %v568, %v392
      %v584 = vmul.f32 %v569, %v393
      %v585 = vmul.f32 %v570, %v394
      %v586 = vmul.f32 %v571, %v395
      %v587 = vmul.f32 %v572, %v396
      %v588 = vmul.f32 %v573, %v397
      %v589 = vmul.f32 %v574, %v398
      %v590 = vadd.f32 %v582, %v583
      %v591 = vadd.f32 %v590, %v584
      %v592 = vadd.f32 %v591, %v585
      %v593 = vadd.f32 %v592, %v586
      %v594 = vadd.f32 %v593, %v587
      %v595 = vadd.f32 %v594, %v588
      %v596 = vadd.f32 %v595, %v589
      %v597 = vadd.f32 %v567, %v568
      %v598 = vadd.f32 %v597, %v569
      %v599 = vadd.f32 %v598, %v570
      %v600 = vadd.f32 %v599, %v571
      %v601 = vadd.f32 %v600, %v572
      %v602 = vadd.f32 %v601, %v573
      %v603 = vadd.f32 %v602, %v574
      %v604 = vadd.f32 %v391, %v392
      %v605 = vadd.f32 %v604, %v393
      %v606 = vadd.f32 %v605, %v394
      %v607 = vadd.f32 %v606, %v395
      %v608 = vadd.f32 %v607, %v396
      %v609 = vadd.f32 %v608, %v397
      %v610 = vadd.f32 %v609, %v398
      %v611 = vadd.f32 %v581, 0.0
      %v612 = vadd.f32 %v596, 0.0
      %v613 = vadd.f32 %v603, 0.0
      %v614 = vadd.f32 %v610, 0.0
      %v615 = vld [vmem:[#allocation7] sm:$0xff]
      %v616 = vadd.f32 %v615, %v611
      %617 = vst [vmem:[#allocation7] sm:$0xff] %v616
      %s618 = scalar_lea.vmem [#allocation7], 8
      %v619 = vld [vmem:[%s618] sm:$0xff]
      %v620 = vadd.f32 %v619, %v612
      %621 = vst [vmem:[%s618] sm:$0xff] %v620
      %s622 = scalar_lea.vmem [#allocation7], 16
      %v623 = vld [vmem:[%s622] sm:$0xff]
      %v624 = vadd.f32 %v623, %v613
      %625 = vst [vmem:[%s622] sm:$0xff] %v624
      %s626 = scalar_lea.vmem [#allocation7], 24
      %v627 = vld [vmem:[%s626] sm:$0xff]
      %v628 = vadd.f32 %v627, %v614
      %629 = vst [vmem:[%s626] sm:$0xff] %v628
    $region29: #{tpu_custom_call.1} parent=1 // pred_fallthru
      _
    // Predicated region
    $region30: #{tpu_custom_call.1} parent=1 // pred_check
      _
    $region31: #{tpu_custom_call.1} parent=1 // pred_check_branch
      %631 = sbr.rel (0) target = $region33
    $region32: #{tpu_custom_call.1} parent=1 // pred_region
      %s633 = ssub.s32 512, 512
      %634 = vsyncadd [#allocation4], %s633
      %s635 = sshll.u32 [#allocation7], 4
      %s636 = int_to_ptr.vmem [resolvable:$true] %s635
      %641 = dma.vmem_to_hbm [thread:$0]  %s636, 512, %s2, [#allocation4], 128, 128, 8
    $region33: #{tpu_custom_call.1} parent=1 // pred_fallthru
      _
    // Predicated region
    $region34: #{tpu_custom_call.1} parent=1 // pred_check
      _
    $region35: #{tpu_custom_call.1} parent=1 // pred_check_branch
      %643 = sbr.rel (0) target = $region37
    $region36: #{tpu_custom_call.1} parent=1 // pred_region
      %644 = dma.done [#allocation4], 512
    $region37: #{tpu_custom_call.1} parent=1 // pred_fallthru
      _
    %645 = vsyncpa [#allocation3], 1
    %646 = vsyncpa [#allocation6], 1
    %647 = vsyncpa [#allocation4], 1

</llo_original>
